<compile_context>
chip_gen: v6e
topology: v6e:2x2x1
jax: 0.10.0
libtpu: 0.0.40
codegen_flags: <defaults>
</compile_context>

<pallas_src>
import functools
import math

import jax
import jax.numpy as jnp
from jax.experimental import pallas as pl
from jax.experimental.pallas import tpu as pltpu


def _stablemax_kernel(x_ref, o_ref, *, clamp_min: float, n_seg: int):
    x = x_ref[...].astype(jnp.float32)
    x = jnp.maximum(x, clamp_min)                        # torch.clamp(min=clamp_min)
    s = jnp.where(x >= 0.0, x + 1.0, 1.0 / (1.0 - x))    # s(x)

    if n_seg == 1:
        denom = jnp.sum(s, axis=-1, keepdims=True) + 1e-9
        o_ref[...] = (s / denom).astype(o_ref.dtype)
    else:
        # `n_seg` independent rows were folded onto the 128-wide lane axis;
        # normalize each contiguous lane segment separately (exact f32 sums,
        # no MXU precision concerns).
        d = s.shape[-1] // n_seg
        for j in range(n_seg):
            sj = s[:, j * d:(j + 1) * d]
            denom = jnp.sum(sj, axis=-1, keepdims=True) + 1e-9
            o_ref[:, j * d:(j + 1) * d] = (sj / denom).astype(o_ref.dtype)


def _round8_down(n: int) -> int:
    return (n // 8) * 8


def _round8_up(n: int) -> int:
    return -(-n // 8) * 8


def _choose_tiling(r_rows: int, w: int, in_it: int, out_it: int):
    """Pick the row-tile size from the per-generation VMEM budget."""
    try:
        vmem_cap = int(pltpu.get_tpu_info().vmem_capacity_bytes)
    except Exception:
        vmem_cap = 64 * 1024 * 1024  # conservative fallback: v7x per-TC VMEM
    budget = int(vmem_cap * 0.70)

    # Per tile row, per grid step: double-buffered input + output blocks plus
    # ~3 f32-sized working copies (x, s, result) of the block.
    per_row = w * (2 * (in_it + out_it) + 3 * 4)
    tile_budget = max(8, _round8_down(budget // per_row))

    # ~16 MiB input blocks already sit at ~85% of HBM roofline; bigger tiles
    # only burn VMEM for no bandwidth gain.
    tile_target = max(8, _round8_down((16 * 1024 * 1024) // (w * in_it)))

    tile_r = min(tile_budget, tile_target, max(8, _round8_up(r_rows)))

    # Guarantee >= 2 grid steps when there is enough work so the "parallel"
    # row axis can be split across both v7x TensorCores.
    if r_rows > 8:
        half = _round8_up((r_rows + 1) // 2)
        tile_r = min(tile_r, max(8, half))

    # Raise the scoped VMEM limit to cover the chosen tile (default is only
    # 16/32 MiB depending on generation).  tile_r <= tile_budget guarantees
    # est_use <= ~0.7 * physical VMEM.
    est_use = per_row * tile_r + (4 << 20)
    vmem_limit = int(min(int(vmem_cap * 0.92), max(est_use, 48 << 20)))
    return tile_r, vmem_limit


def stablemax(logits: jax.Array, dim: int = -1, clamp_min: float = -10.0) -> jax.Array:
    ndim = logits.ndim
    dim = dim % ndim

    # Skip the (full extra HBM pass) transpose when the reduction dim is
    # already minormost.
    if dim != ndim - 1:
        # TODO(synk): for dim == ndim-2, reduce over the sublane axis in-kernel
        # instead of paying this HBM round-trip.
        perm = tuple(i for i in range(ndim) if i != dim) + (dim,)
        x = jnp.transpose(logits, perm)
    else:
        perm = None
        x = logits

    lead_shape = x.shape[:-1]
    D = int(x.shape[-1])
    R = int(math.prod(lead_shape)) if lead_shape else 1
    x2 = x.reshape(R, D)

    # Lane-dense folding: pack several rows onto one 128-wide lane row when
    # the feature dim is small, so DMAs and vreg stores are unmasked.
    pack = 128 // D if (8 <= D < 128 and 128 % D == 0) else 1
    W = pack * D

    r_fold = -(-R // pack)          # rows after folding
    r_pre = r_fold * pack           # rows before folding, padded to multiple of pack
    if r_pre != R:
        x2 = jnp.pad(x2, ((0, r_pre - R), (0, 0)))
    x2 = x2.reshape(r_fold, W)

    in_it = jnp.dtype(x2.dtype).itemsize
    out_it = jnp.dtype(logits.dtype).itemsize
    tile_r, vmem_limit = _choose_tiling(r_fold, W, in_it, out_it)

    # Pad rows up to a multiple of the tile instead of shrinking the tile.
    r_grid = pl.cdiv(r_fold, tile_r) * tile_r
    if r_grid != r_fold:
        x2 = jnp.pad(x2, ((0, r_grid - r_fold), (0, 0)))
    grid = (r_grid // tile_r,)

    cost = pl.CostEstimate(
        flops=5 * r_grid * W,
        transcendentals=0,
        bytes_accessed=r_grid * W * (in_it + out_it),
    )

    out2 = pl.pallas_call(
        functools.partial(_stablemax_kernel,
                          clamp_min=float(clamp_min), n_seg=pack),
        out_shape=jax.ShapeDtypeStruct((r_grid, W), logits.dtype),
        grid_spec=pltpu.PrefetchScalarGridSpec(
            num_scalar_prefetch=0,
            grid=grid,
            in_specs=[pl.BlockSpec((tile_r, W), lambda i: (i, 0))],
            out_specs=pl.BlockSpec((tile_r, W), lambda i: (i, 0)),
        ),
        compiler_params=pltpu.CompilerParams(
            dimension_semantics=("parallel",),
            vmem_limit_bytes=vmem_limit,
        ),
        cost_estimate=cost,
    )(x2)

    # Undo padding / folding.
    out = out2[:r_fold].reshape(r_pre, D)[:R].reshape(lead_shape + (D,))
    if perm is not None:
        inv_perm = [0] * ndim
        for i, p in enumerate(perm):
            inv_perm[p] = i
        out = jnp.transpose(out, inv_perm)
    return out


def stablemax_ref(logits, dim=-1, clamp_min=-10.0):
    x = jnp.maximum(logits, clamp_min)
    s = jnp.where(x >= 0, x + 1.0, 1.0 / (1.0 - x))
    return s / (jnp.sum(s, axis=dim, keepdims=True) + 1e-9)


if __name__ == "__main__":
    key = jax.random.PRNGKey(0)
    k0, k1 = jax.random.split(key)

    # Main case: logits tensor (batch=2, seq=8, hidden=32), dim=-1
    # (exercises the lane-dense fold path, D=32 -> pack=4).
    x = jax.random.normal(k0, (2, 8, 32), dtype=jnp.float32) * 5.0
    out = jax.block_until_ready(stablemax(x, dim=-1, clamp_min=-10.0))
    ref = stablemax_ref(x, dim=-1, clamp_min=-10.0)
    assert out.shape == x.shape and out.dtype == x.dtype
    assert jnp.allclose(out, ref, atol=1e-5, rtol=1e-5), "mismatch vs reference (dim=-1)"
    assert jnp.allclose(jnp.sum(out, axis=-1), 1.0, atol=1e-4)

    # Non-last dim (exercises the transpose path + small-D fold).
    out1 = jax.block_until_ready(stablemax(x, dim=1, clamp_min=-10.0))
    ref1 = stablemax_ref(x, dim=1, clamp_min=-10.0)
    assert jnp.allclose(out1, ref1, atol=1e-5, rtol=1e-5), "mismatch vs reference (dim=1)"
    assert jnp.allclose(jnp.sum(out1, axis=1), 1.0, atol=1e-4)

    # Wide / non-multiple-of-128 feature dim with row padding (no fold path).
    y = jax.random.normal(k1, (2, 12, 160), dtype=jnp.float32) * 5.0
    outy = jax.block_until_ready(stablemax(y, dim=-1, clamp_min=-10.0))
    refy = stablemax_ref(y, dim=-1, clamp_min=-10.0)
    assert outy.shape == y.shape and outy.dtype == y.dtype
    assert jnp.allclose(outy, refy, atol=1e-5, rtol=1e-5), "mismatch vs reference (wide D)"
    assert jnp.allclose(jnp.sum(outy, axis=-1), 1.0, atol=1e-4)

    print("KERNEL_OK")
</pallas_src>

<mosaic_0001>
module attributes {stable_mosaic.version = 11 : i64} {
  func.func @_stablemax_kernel(%arg0: i32, %arg1: memref<8x128xf32, #tpu.memory_space<vmem>>, %arg2: memref<8x128xf32, #tpu.memory_space<vmem>>) attributes {dimension_semantics = [#tpu.dimension_semantics<parallel>], iteration_bounds = array<i64: 1>, scalar_prefetch = 0 : i64, scratch_operands = 0 : i64, tpu.core_type = #tpu.core_type<tc>, window_params = [{transform_indices = @transform_0, window_bounds = array<i64: 8, 128>}, {transform_indices = @transform_1, window_bounds = array<i64: 8, 128>}]} {
    %c0 = arith.constant 0 : index
    %c0_0 = arith.constant 0 : index
    %0 = vector.load %arg1[%c0, %c0_0] : memref<8x128xf32, #tpu.memory_space<vmem>>, vector<8x128xf32>
    %cst = arith.constant -1.000000e+01 : f32
    %1 = vector.broadcast %cst : f32 to vector<8x128xf32>
    %2 = arith.maximumf %0, %1 : vector<8x128xf32>
    %cst_1 = arith.constant 0.000000e+00 : f32
    %3 = vector.broadcast %cst_1 : f32 to vector<8x128xf32>
    %4 = arith.cmpf oge, %2, %3 : vector<8x128xf32>
    %cst_2 = arith.constant 1.000000e+00 : f32
    %5 = vector.broadcast %cst_2 : f32 to vector<8x128xf32>
    %6 = arith.addf %2, %5 : vector<8x128xf32>
    %cst_3 = arith.constant 1.000000e+00 : f32
    %7 = vector.broadcast %cst_3 : f32 to vector<8x128xf32>
    %8 = arith.subf %7, %2 : vector<8x128xf32>
    %cst_4 = arith.constant 1.000000e+00 : f32
    %9 = vector.broadcast %cst_4 : f32 to vector<8x128xf32>
    %10 = arith.divf %9, %8 : vector<8x128xf32>
    %11 = arith.select %4, %6, %10 : vector<8x128xi1>, vector<8x128xf32>
    %12 = vector.extract_strided_slice %11 {offsets = [0, 0], sizes = [8, 32], strides = [1, 1]} : vector<8x128xf32> to vector<8x32xf32>
    %cst_5 = arith.constant dense<0.000000e+00> : vector<8xf32>
    %13 = vector.multi_reduction <add>, %12, %cst_5 [1] : vector<8x32xf32> to vector<8xf32>
    %14 = vector.shape_cast %13 : vector<8xf32> to vector<8x1xf32>
    %cst_6 = arith.constant 9.99999971E-10 : f32
    %15 = vector.broadcast %cst_6 : f32 to vector<8x1xf32>
    %16 = arith.addf %14, %15 : vector<8x1xf32>
    %17 = vector.broadcast %16 : vector<8x1xf32> to vector<8x32xf32>
    %18 = arith.divf %12, %17 : vector<8x32xf32>
    %c0_7 = arith.constant 0 : index
    %c0_8 = arith.constant 0 : index
    %19 = vector.load %arg2[%c0_7, %c0_8] : memref<8x128xf32, #tpu.memory_space<vmem>>, vector<8x32xf32>
    tpu.vector_store %arg2[%c0_7, %c0_8], %18 {strides = array<i32>} : memref<8x128xf32, #tpu.memory_space<vmem>>, vector<8x32xf32>,
    %20 = vector.extract_strided_slice %11 {offsets = [0, 32], sizes = [8, 32], strides = [1, 1]} : vector<8x128xf32> to vector<8x32xf32>
    %cst_9 = arith.constant dense<0.000000e+00> : vector<8xf32>
    %21 = vector.multi_reduction <add>, %20, %cst_9 [1] : vector<8x32xf32> to vector<8xf32>
    %22 = vector.shape_cast %21 : vector<8xf32> to vector<8x1xf32>
    %cst_10 = arith.constant 9.99999971E-10 : f32
    %23 = vector.broadcast %cst_10 : f32 to vector<8x1xf32>
    %24 = arith.addf %22, %23 : vector<8x1xf32>
    %25 = vector.broadcast %24 : vector<8x1xf32> to vector<8x32xf32>
    %26 = arith.divf %20, %25 : vector<8x32xf32>
    %c0_11 = arith.constant 0 : index
    %c32 = arith.constant 32 : index
    %27 = vector.load %arg2[%c0_11, %c32] : memref<8x128xf32, #tpu.memory_space<vmem>>, vector<8x32xf32>
    tpu.vector_store %arg2[%c0_11, %c32], %26 {strides = array<i32>} : memref<8x128xf32, #tpu.memory_space<vmem>>, vector<8x32xf32>,
    %28 = vector.extract_strided_slice %11 {offsets = [0, 64], sizes = [8, 32], strides = [1, 1]} : vector<8x128xf32> to vector<8x32xf32>
    %cst_12 = arith.constant dense<0.000000e+00> : vector<8xf32>
    %29 = vector.multi_reduction <add>, %28, %cst_12 [1] : vector<8x32xf32> to vector<8xf32>
    %30 = vector.shape_cast %29 : vector<8xf32> to vector<8x1xf32>
    %cst_13 = arith.constant 9.99999971E-10 : f32
    %31 = vector.broadcast %cst_13 : f32 to vector<8x1xf32>
    %32 = arith.addf %30, %31 : vector<8x1xf32>
    %33 = vector.broadcast %32 : vector<8x1xf32> to vector<8x32xf32>
    %34 = arith.divf %28, %33 : vector<8x32xf32>
    %c0_14 = arith.constant 0 : index
    %c64 = arith.constant 64 : index
    %35 = vector.load %arg2[%c0_14, %c64] : memref<8x128xf32, #tpu.memory_space<vmem>>, vector<8x32xf32>
    tpu.vector_store %arg2[%c0_14, %c64], %34 {strides = array<i32>} : memref<8x128xf32, #tpu.memory_space<vmem>>, vector<8x32xf32>,
    %36 = vector.extract_strided_slice %11 {offsets = [0, 96], sizes = [8, 32], strides = [1, 1]} : vector<8x128xf32> to vector<8x32xf32>
    %cst_15 = arith.constant dense<0.000000e+00> : vector<8xf32>
    %37 = vector.multi_reduction <add>, %36, %cst_15 [1] : vector<8x32xf32> to vector<8xf32>
    %38 = vector.shape_cast %37 : vector<8xf32> to vector<8x1xf32>
    %cst_16 = arith.constant 9.99999971E-10 : f32
    %39 = vector.broadcast %cst_16 : f32 to vector<8x1xf32>
    %40 = arith.addf %38, %39 : vector<8x1xf32>
    %41 = vector.broadcast %40 : vector<8x1xf32> to vector<8x32xf32>
    %42 = arith.divf %36, %41 : vector<8x32xf32>
    %c0_17 = arith.constant 0 : index
    %c96 = arith.constant 96 : index
    %43 = vector.load %arg2[%c0_17, %c96] : memref<8x128xf32, #tpu.memory_space<vmem>>, vector<8x32xf32>
    tpu.vector_store %arg2[%c0_17, %c96], %42 {strides = array<i32>} : memref<8x128xf32, #tpu.memory_space<vmem>>, vector<8x32xf32>,
    return
  }
  func.func @transform_0(%arg0: i32) -> (i32, i32) {
    %c0_i32 = arith.constant 0 : i32
    %c0_i32_0 = arith.constant 0 : i32
    return %arg0, %c0_i32 : i32, i32
  }
  func.func @transform_1(%arg0: i32) -> (i32, i32) {
    %c0_i32 = arith.constant 0 : i32
    %c0_i32_0 = arith.constant 0 : i32
    return %arg0, %c0_i32 : i32, i32
  }
}

</mosaic_0001>

<llo_original>
// kernel: tpu_custom_call.1
$region0: #{tpu_custom_call.1}
  #allocation0 [shape = 'u32[]', space=smem, size = 0x4, offset = 0x4, fixed_abs, tag = 'smem constant byte address 0x4 - core index']
  #allocation1 [shape = 'u32[144,128]{1,0:T(1,128)}', space=vmem, size = 0x12000, scoped, tag = 'internal scratch']
  %s0 = inlined_call_operand.hbm [shape: f32[8,128], index: 0, kind: input, shape index: {}]
  %s1 = inlined_call_operand.hbm [shape: f32[8,128], index: 1, kind: output, shape index: {}]
  %s2 = sld [smem:[#allocation0]]
  $region18: #{tpu_custom_call.1} parent=0
    _
  %s4 = ssub.s32 1, %s2
  %s5 = scalar_select 0, %s4, %s2
  $region1: #{tpu_custom_call.1} parent=0
    #allocation2 [shape = 'u8[4096]{0}', space=vmem, size = 0x1000, scoped, tag = 'input window, operand 0, single buffered']
    #allocation3 [shape = 's32[1]{0}', space=sflag, size = 0x4, scoped, tag = 'scoped memory for tpu_custom_call.1']
    #allocation4 [shape = 's32[1]{0}', space=sflag, size = 0x4, scoped, tag = 'scoped memory for tpu_custom_call.1']
    #allocation5 [shape = 'u8[4096]{0}', space=vmem, size = 0x1000, scoped, tag = 'output window, operand 0, single buffered']
    %6 = vsyncpa [#allocation3], 0
    %7 = vsyncpa [#allocation4], 0
    // Predicated region
    $region2: #{tpu_custom_call.1} parent=1 // pred_check
      _
    $region3: #{tpu_custom_call.1} parent=1 // pred_check_branch
      %9 = sbr.rel (0) target = $region5
    $region4: #{tpu_custom_call.1} parent=1 // pred_region
      %s11 = ssub.s32 128, 128
      %12 = vsyncadd [#allocation3], %s11
      %s14 = sshll.u32 [#allocation2], 4
      %s15 = int_to_ptr.vmem [resolvable:$true] %s14
      %17 = dma.hbm_to_vmem [thread:$0]  %s0, 128, %s15, [#allocation3]
    $region5: #{tpu_custom_call.1} parent=1 // pred_fallthru
      _
    // Predicated region
    $region6: #{tpu_custom_call.1} parent=1 // pred_check
      _
    $region7: #{tpu_custom_call.1} parent=1 // pred_check_branch
      %19 = sbr.rel (0) target = $region9
    $region8: #{tpu_custom_call.1} parent=1 // pred_region
      %20 = dma.done [#allocation3], 128
    $region9: #{tpu_custom_call.1} parent=1 // pred_fallthru
      _
    %v21 = vld [vmem:[#allocation2] sm:$0xff]
    %v22 = vmax.f32 %v21, -10.0
    %vm23 = vcmp.ge.f32.partialorder %v22, 0.0
    %v24 = vadd.f32 %v22, 1.0
    %v25 = vsub.f32 1.0, %v22
    %v26 = vrcp.pop %v25
    %v27 = vmul.f32 1.0, %v26
    %v28 = vsel %vm23, %v24, %v27
    %vm29 = vcmask 261120
    %v30 = vsel %vm29, %v28, 0.0
    %31 = vadd.xlane.f32.xlu0 %v30
    %v32 = vpop.xlane.xlu0 %31
    %v33 = vadd.f32 %v32, 1e-09
    %v34 = vrcp.pop %v33
    %v35 = vmul.f32 %v28, %v34
    %36 = vst.msk [vmem:[#allocation5] sm:$0xff] %vm29, %v35
    %38 = vrot.lane.b32.xlu0 %v28, 96
    %v39 = vpop.permute.xlu0 %38
    %v41 = vsel %vm29, %v39, 0.0
    %42 = vadd.xlane.f32.xlu0 %v41
    %v43 = vpop.xlane.xlu0 %42
    %v44 = vadd.f32 %v43, 1e-09
    %v45 = vrcp.pop %v44
    %v46 = vmul.f32 %v28, %v45
    %vm47 = vcmask 523520
    %48 = vst.msk [vmem:[#allocation5] sm:$0xff] %vm47, %v46
    %49 = vrot.lane.b32.xlu0 %v28, 64
    %v50 = vpop.permute.xlu0 %49
    %v52 = vsel %vm29, %v50, 0.0
    %53 = vadd.xlane.f32.xlu0 %v52
    %v54 = vpop.xlane.xlu0 %53
    %v55 = vadd.f32 %v54, 1e-09
    %v56 = vrcp.pop %v55
    %v57 = vmul.f32 %v28, %v56
    %vm58 = vcmask 785920
    %59 = vst.msk [vmem:[#allocation5] sm:$0xff] %vm58, %v57
    %60 = vrot.lane.b32.xlu0 %v28, 32
    %v61 = vpop.permute.xlu0 %60
    %v63 = vsel %vm29, %v61, 0.0
    %64 = vadd.xlane.f32.xlu0 %v63
    %v65 = vpop.xlane.xlu0 %64
    %v66 = vadd.f32 %v65, 1e-09
    %v67 = vrcp.pop %v66
    %v68 = vmul.f32 %v28, %v67
    %vm69 = vcmask 1048320
    %70 = vst.msk [vmem:[#allocation5] sm:$0xff] %vm69, %v68
    // Predicated region
    $region10: #{tpu_custom_call.1} parent=1 // pred_check
      _
    $region11: #{tpu_custom_call.1} parent=1 // pred_check_branch
      %72 = sbr.rel (0) target = $region13
    $region12: #{tpu_custom_call.1} parent=1 // pred_region
      %s74 = ssub.s32 128, 128
      %75 = vsyncadd [#allocation4], %s74
      %s77 = sshll.u32 [#allocation5], 4
      %s78 = int_to_ptr.vmem [resolvable:$true] %s77
      %80 = dma.vmem_to_hbm [thread:$0]  %s78, 128, %s1, [#allocation4]
    $region13: #{tpu_custom_call.1} parent=1 // pred_fallthru
      _
    // Predicated region
    $region14: #{tpu_custom_call.1} parent=1 // pred_check
      _
    $region15: #{tpu_custom_call.1} parent=1 // pred_check_branch
      %82 = sbr.rel (0) target = $region17
    $region16: #{tpu_custom_call.1} parent=1 // pred_region
      %83 = dma.done [#allocation4], 128
    $region17: #{tpu_custom_call.1} parent=1 // pred_fallthru
      _
    %84 = vsyncpa [#allocation3], 1
    %85 = vsyncpa [#allocation4], 1

</llo_original>
